<compile_context>
chip_gen: v7x
topology: tpu7x:2x2x1
jax: 0.10.0
libtpu: 0.0.40
codegen_flags: <defaults>
</compile_context>

<pallas_src>
import functools

import jax
import jax.numpy as jnp
from jax.experimental import pallas as pl
from jax.experimental.pallas import tpu as pltpu


# ---------------------------------------------------------------------------
# Kernel
# ---------------------------------------------------------------------------
def _qk_conv1x1_kernel(x_ref, wq_ref, wk_ref, q_ref, k_ref):
    """1x1 conv producing the q and k channel halves directly.

    x_ref : (C, T)      channels on sublanes, spatial positions on lanes
    wq_ref: (inner, C)  q-half of the 1x1-conv weight (resident in VMEM)
    wk_ref: (inner, C)  k-half
    q_ref : (inner, T)
    k_ref : (inner, T)
    """
    C = x_ref.shape[0]
    if C <= 32:
        # Tiny contraction: the MXU pads K to 128/256 so it would be poorly
        # utilized; C broadcast FMAs on the VPU are enough and hide under the
        # store-bound DMA path.  (Per-term broadcasts are cheap filler here;
        # only revisit if a bundle dump shows XLU/spill pressure.)
        x = x_ref[...].astype(jnp.float32)
        wq = wq_ref[...].astype(jnp.float32)
        wk = wk_ref[...].astype(jnp.float32)
        xc = x[0:1, :]
        q_acc = wq[:, 0:1] * xc
        k_acc = wk[:, 0:1] * xc
        for c in range(1, C):
            xc = x[c:c + 1, :]
            q_acc = q_acc + wq[:, c:c + 1] * xc
            k_acc = k_acc + wk[:, c:c + 1] * xc
    else:
        q_acc = jnp.dot(wq_ref[...], x_ref[...], preferred_element_type=jnp.float32)
        k_acc = jnp.dot(wk_ref[...], x_ref[...], preferred_element_type=jnp.float32)
    q_ref[...] = q_acc.astype(q_ref.dtype)
    k_ref[...] = k_acc.astype(k_ref.dtype)


# ---------------------------------------------------------------------------
# Tiling heuristics
# ---------------------------------------------------------------------------
def _pick_spatial_tile(hw, C, inner, b):
    """Largest lane-dense spatial tile that fits a conservative VMEM budget."""
    # Double-buffered VMEM per spatial column: x block + q block + k block (f32).
    bytes_per_col = 2 * (C + 2 * inner) * 4
    budget = 16 * 1024 * 1024  # leaves headroom under the 32 MiB scoped limit
    t_budget = max(128, budget // bytes_per_col)
    cap = max(128, min(4096, (t_budget // 128) * 128))

    if hw % 128 == 0:
        T = min(cap, hw)
    elif hw <= cap:
        T = hw            # single full-extent tile (== full dim, (8,128) rule ok)
    else:
        T = cap           # ragged final tile -> Pallas masks the partial store

    n_tiles = pl.cdiv(hw, T)
    # v7x megacore: keep total program count >= 2 / even when batch is 1.
    if b == 1 and (n_tiles % 2 == 1) and T % 256 == 0:
        T = T // 2
        n_tiles = pl.cdiv(hw, T)
    return T, n_tiles


# ---------------------------------------------------------------------------
# Forward (jitted)
# ---------------------------------------------------------------------------
@functools.partial(jax.jit, static_argnames=("out_dtype",))
def attention_qk_forward(fmap, wq, wk, out_dtype=None):
    """q, k halves of a 1x1 conv, computed in native NCHW layout.

    fmap: (b, C, H, W);  wq, wk: (inner, C)
    Returns (q, k), each (b, inner, H, W).
    """
    b, C, H, W = fmap.shape
    inner = wq.shape[0]
    hw = H * W
    out_dtype = fmap.dtype if out_dtype is None else out_dtype

    x_flat = fmap.reshape(b, C, hw)
    T, n_tiles = _pick_spatial_tile(hw, C, inner, b)
    grid = (b, n_tiles)

    out_itemsize = jnp.dtype(out_dtype).itemsize
    cost = pl.CostEstimate(
        flops=2 * b * hw * C * 2 * inner,
        transcendentals=0,
        bytes_accessed=(x_flat.size * x_flat.dtype.itemsize
                        + (wq.size + wk.size) * wq.dtype.itemsize
                        + 2 * b * inner * hw * out_itemsize),
    )

    q, k = pl.pallas_call(
        _qk_conv1x1_kernel,
        out_shape=(jax.ShapeDtypeStruct((b, inner, hw), out_dtype),
                   jax.ShapeDtypeStruct((b, inner, hw), out_dtype)),
        grid_spec=pltpu.PrefetchScalarGridSpec(
            num_scalar_prefetch=0,
            grid=grid,
            in_specs=[
                # Batch dim squeezed out of the kernel view; spatial on lanes.
                pl.BlockSpec((None, C, T), lambda bi, si: (bi, 0, si)),
                # Full weight halves resident across all grid steps.
                pl.BlockSpec((inner, C), lambda bi, si: (0, 0)),
                pl.BlockSpec((inner, C), lambda bi, si: (0, 0)),
            ],
            out_specs=[
                pl.BlockSpec((None, inner, T), lambda bi, si: (bi, 0, si)),
                pl.BlockSpec((None, inner, T), lambda bi, si: (bi, 0, si)),
            ],
        ),
        compiler_params=pltpu.CompilerParams(
            dimension_semantics=("parallel", "parallel"),
            vmem_limit_bytes=32 * 1024 * 1024,
        ),
        cost_estimate=cost,
    )(x_flat, wq, wk)

    return q.reshape(b, inner, H, W), k.reshape(b, inner, H, W)


# ---------------------------------------------------------------------------
# Module wrapper
# ---------------------------------------------------------------------------
class AttentionPallas:
    """JAX/Pallas equivalent of the PyTorch Attention module's forward."""

    def __init__(self, dim, max_pos_size=100, heads=1, dim_head=128, key=None,
                 out_dtype=None):
        self.heads = heads
        self.scale = dim_head ** (-0.5)  # computed but (like the reference) unused in forward
        self.inner_dim = heads * dim_head
        # Opt-in bf16 output halves HBM writeback; None keeps exact f32 parity.
        self.out_dtype = out_dtype
        if key is None:
            key = jax.random.PRNGKey(0)
        out_ch = self.inner_dim * 2
        # Conv2d(dim, inner_dim*2, 1, bias=False): weight (O, C, 1, 1), default PyTorch init range.
        bound = 1.0 / (dim ** 0.5)
        self.weight = jax.random.uniform(
            key, (out_ch, dim, 1, 1), minval=-bound, maxval=bound, dtype=jnp.float32)
        # Hoisted once: q/k halves as 2-D matrices (no per-call transpose/slice).
        w2d = self.weight[:, :, 0, 0]
        self.wq = w2d[: self.inner_dim]
        self.wk = w2d[self.inner_dim:]

    def __call__(self, fmap):
        # fmap: (b, c, h, w) NCHW, same as PyTorch.  Stays NCHW end to end.
        return attention_qk_forward(fmap, self.wq, self.wk, out_dtype=self.out_dtype)


if __name__ == "__main__":
    key = jax.random.PRNGKey(0)
    k_x, k_w = jax.random.split(key)

    # Small shapes consistent with the module: dim=4 channels, batch=2, 16x16 spatial.
    b, c, h, w = 2, 4, 16, 16
    fmap = jax.random.normal(k_x, (b, c, h, w), dtype=jnp.float32)

    attn = AttentionPallas(dim=c, heads=1, dim_head=128, key=k_w)
    q, k = attn(fmap)
    jax.block_until_ready((q, k))

    # Reference check against plain-JAX 1x1 conv (einsum).
    ref = jnp.einsum("oc,bchw->bohw", attn.weight[:, :, 0, 0], fmap)
    ref_q, ref_k = ref[:, :attn.inner_dim], ref[:, attn.inner_dim:]
    assert q.shape == (b, attn.inner_dim, h, w) and k.shape == (b, attn.inner_dim, h, w)
    assert jnp.allclose(q, ref_q, atol=1e-5, rtol=1e-5)
    assert jnp.allclose(k, ref_k, atol=1e-5, rtol=1e-5)

    print("KERNEL_OK")
</pallas_src>

<mosaic_0001>
module attributes {stable_mosaic.version = 11 : i64} {
  func.func @_qk_conv1x1_kernel(%arg0: i32, %arg1: i32, %arg2: memref<1x4x256xf32, #tpu.memory_space<vmem>>, %arg3: memref<128x4xf32, #tpu.memory_space<vmem>>, %arg4: memref<128x4xf32, #tpu.memory_space<vmem>>, %arg5: memref<1x128x256xf32, #tpu.memory_space<vmem>>, %arg6: memref<1x128x256xf32, #tpu.memory_space<vmem>>) attributes {dimension_semantics = [#tpu.dimension_semantics<parallel>, #tpu.dimension_semantics<parallel>], iteration_bounds = array<i64: 2, 1>, scalar_prefetch = 0 : i64, scratch_operands = 0 : i64, tpu.core_type = #tpu.core_type<tc>, window_params = [{transform_indices = @transform_0, window_bounds = array<i64: 1, 4, 256>}, {pipeline_mode = #tpu.pipeline_mode<synchronous>, transform_indices = @transform_1, window_bounds = array<i64: 128, 4>}, {pipeline_mode = #tpu.pipeline_mode<synchronous>, transform_indices = @transform_2, window_bounds = array<i64: 128, 4>}, {transform_indices = @transform_3, window_bounds = array<i64: 1, 128, 256>}, {transform_indices = @transform_4, window_bounds = array<i64: 1, 128, 256>}]} {
    %c0 = arith.constant 0 : index
    %c0_0 = arith.constant 0 : index
    %c0_1 = arith.constant 0 : index
    %0 = vector.load %arg2[%c0, %c0_0, %c0_1] : memref<1x4x256xf32, #tpu.memory_space<vmem>>, vector<1x4x256xf32>
    %1 = vector.shape_cast %0 : vector<1x4x256xf32> to vector<4x256xf32>
    %c0_2 = arith.constant 0 : index
    %c0_3 = arith.constant 0 : index
    %2 = vector.load %arg3[%c0_2, %c0_3] : memref<128x4xf32, #tpu.memory_space<vmem>>, vector<128x4xf32>
    %c0_4 = arith.constant 0 : index
    %c0_5 = arith.constant 0 : index
    %3 = vector.load %arg4[%c0_4, %c0_5] : memref<128x4xf32, #tpu.memory_space<vmem>>, vector<128x4xf32>
    %4 = vector.extract_strided_slice %1 {offsets = [0, 0], sizes = [1, 256], strides = [1, 1]} : vector<4x256xf32> to vector<1x256xf32>
    %5 = vector.extract_strided_slice %2 {offsets = [0, 0], sizes = [128, 1], strides = [1, 1]} : vector<128x4xf32> to vector<128x1xf32>
    %6 = vector.broadcast %5 : vector<128x1xf32> to vector<128x256xf32>
    %7 = vector.broadcast %4 : vector<1x256xf32> to vector<128x256xf32>
    %8 = arith.mulf %6, %7 : vector<128x256xf32>
    %9 = vector.extract_strided_slice %3 {offsets = [0, 0], sizes = [128, 1], strides = [1, 1]} : vector<128x4xf32> to vector<128x1xf32>
    %10 = vector.broadcast %9 : vector<128x1xf32> to vector<128x256xf32>
    %11 = vector.broadcast %4 : vector<1x256xf32> to vector<128x256xf32>
    %12 = arith.mulf %10, %11 : vector<128x256xf32>
    %13 = vector.extract_strided_slice %1 {offsets = [1, 0], sizes = [1, 256], strides = [1, 1]} : vector<4x256xf32> to vector<1x256xf32>
    %14 = vector.extract_strided_slice %2 {offsets = [0, 1], sizes = [128, 1], strides = [1, 1]} : vector<128x4xf32> to vector<128x1xf32>
    %15 = vector.broadcast %14 : vector<128x1xf32> to vector<128x256xf32>
    %16 = vector.broadcast %13 : vector<1x256xf32> to vector<128x256xf32>
    %17 = arith.mulf %15, %16 : vector<128x256xf32>
    %18 = arith.addf %8, %17 : vector<128x256xf32>
    %19 = vector.extract_strided_slice %3 {offsets = [0, 1], sizes = [128, 1], strides = [1, 1]} : vector<128x4xf32> to vector<128x1xf32>
    %20 = vector.broadcast %19 : vector<128x1xf32> to vector<128x256xf32>
    %21 = vector.broadcast %13 : vector<1x256xf32> to vector<128x256xf32>
    %22 = arith.mulf %20, %21 : vector<128x256xf32>
    %23 = arith.addf %12, %22 : vector<128x256xf32>
    %24 = vector.extract_strided_slice %1 {offsets = [2, 0], sizes = [1, 256], strides = [1, 1]} : vector<4x256xf32> to vector<1x256xf32>
    %25 = vector.extract_strided_slice %2 {offsets = [0, 2], sizes = [128, 1], strides = [1, 1]} : vector<128x4xf32> to vector<128x1xf32>
    %26 = vector.broadcast %25 : vector<128x1xf32> to vector<128x256xf32>
    %27 = vector.broadcast %24 : vector<1x256xf32> to vector<128x256xf32>
    %28 = arith.mulf %26, %27 : vector<128x256xf32>
    %29 = arith.addf %18, %28 : vector<128x256xf32>
    %30 = vector.extract_strided_slice %3 {offsets = [0, 2], sizes = [128, 1], strides = [1, 1]} : vector<128x4xf32> to vector<128x1xf32>
    %31 = vector.broadcast %30 : vector<128x1xf32> to vector<128x256xf32>
    %32 = vector.broadcast %24 : vector<1x256xf32> to vector<128x256xf32>
    %33 = arith.mulf %31, %32 : vector<128x256xf32>
    %34 = arith.addf %23, %33 : vector<128x256xf32>
    %35 = vector.extract_strided_slice %1 {offsets = [3, 0], sizes = [1, 256], strides = [1, 1]} : vector<4x256xf32> to vector<1x256xf32>
    %36 = vector.extract_strided_slice %2 {offsets = [0, 3], sizes = [128, 1], strides = [1, 1]} : vector<128x4xf32> to vector<128x1xf32>
    %37 = vector.broadcast %36 : vector<128x1xf32> to vector<128x256xf32>
    %38 = vector.broadcast %35 : vector<1x256xf32> to vector<128x256xf32>
    %39 = arith.mulf %37, %38 : vector<128x256xf32>
    %40 = arith.addf %29, %39 : vector<128x256xf32>
    %41 = vector.extract_strided_slice %3 {offsets = [0, 3], sizes = [128, 1], strides = [1, 1]} : vector<128x4xf32> to vector<128x1xf32>
    %42 = vector.broadcast %41 : vector<128x1xf32> to vector<128x256xf32>
    %43 = vector.broadcast %35 : vector<1x256xf32> to vector<128x256xf32>
    %44 = arith.mulf %42, %43 : vector<128x256xf32>
    %45 = arith.addf %34, %44 : vector<128x256xf32>
    %c0_6 = arith.constant 0 : index
    %c0_7 = arith.constant 0 : index
    %c0_8 = arith.constant 0 : index
    %46 = vector.load %arg5[%c0_6, %c0_7, %c0_8] : memref<1x128x256xf32, #tpu.memory_space<vmem>>, vector<1x128x256xf32>
    %47 = vector.shape_cast %46 : vector<1x128x256xf32> to vector<128x256xf32>
    %48 = vector.shape_cast %40 : vector<128x256xf32> to vector<1x128x256xf32>
    tpu.vector_store %arg5[%c0_6, %c0_7, %c0_8], %48 {strides = array<i32>} : memref<1x128x256xf32, #tpu.memory_space<vmem>>, vector<1x128x256xf32>,
    %c0_9 = arith.constant 0 : index
    %c0_10 = arith.constant 0 : index
    %c0_11 = arith.constant 0 : index
    %49 = vector.load %arg6[%c0_9, %c0_10, %c0_11] : memref<1x128x256xf32, #tpu.memory_space<vmem>>, vector<1x128x256xf32>
    %50 = vector.shape_cast %49 : vector<1x128x256xf32> to vector<128x256xf32>
    %51 = vector.shape_cast %45 : vector<128x256xf32> to vector<1x128x256xf32>
    tpu.vector_store %arg6[%c0_9, %c0_10, %c0_11], %51 {strides = array<i32>} : memref<1x128x256xf32, #tpu.memory_space<vmem>>, vector<1x128x256xf32>,
    return
  }
  func.func @transform_0(%arg0: i32, %arg1: i32) -> (i32, i32, i32) {
    %c0_i32 = arith.constant 0 : i32
    %c0_i32_0 = arith.constant 0 : i32
    return %arg0, %c0_i32, %arg1 : i32, i32, i32
  }
  func.func @transform_1(%arg0: i32, %arg1: i32) -> (i32, i32) {
    %c0_i32 = arith.constant 0 : i32
    %c0_i32_0 = arith.constant 0 : i32
    %c0_i32_1 = arith.constant 0 : i32
    return %c0_i32, %c0_i32_0 : i32, i32
  }
  func.func @transform_2(%arg0: i32, %arg1: i32) -> (i32, i32) {
    %c0_i32 = arith.constant 0 : i32
    %c0_i32_0 = arith.constant 0 : i32
    %c0_i32_1 = arith.constant 0 : i32
    return %c0_i32, %c0_i32_0 : i32, i32
  }
  func.func @transform_3(%arg0: i32, %arg1: i32) -> (i32, i32, i32) {
    %c0_i32 = arith.constant 0 : i32
    %c0_i32_0 = arith.constant 0 : i32
    return %arg0, %c0_i32, %arg1 : i32, i32, i32
  }
  func.func @transform_4(%arg0: i32, %arg1: i32) -> (i32, i32, i32) {
    %c0_i32 = arith.constant 0 : i32
    %c0_i32_0 = arith.constant 0 : i32
    return %arg0, %c0_i32, %arg1 : i32, i32, i32
  }
}

</mosaic_0001>

<llo_original>
// kernel: attention_qk_forward.1
$region0: #{attention_qk_forward.1}
  #allocation0 [shape = 'u32[]', space=smem, size = 0x4, offset = 0x4, fixed_abs, tag = 'smem constant byte address 0x4 - core index']
  #allocation1 [shape = 'u32[144,128]{1,0:T(1,128)}', space=vmem, size = 0x12000, scoped, tag = 'internal scratch']
  %s0 = inlined_call_operand.vmem [shape: f32[2,4,256], index: 0, kind: input, shape index: {}]
  %s1 = inlined_call_operand.vmem [shape: f32[128,4], index: 1, kind: input, shape index: {}]
  %s2 = inlined_call_operand.vmem [shape: f32[128,4], index: 2, kind: input, shape index: {}]
  %s3 = inlined_call_operand.vmem [shape: f32[2,128,256], index: 3, kind: output, shape index: {0}]
  %s4 = inlined_call_operand.vmem [shape: f32[2,128,256], index: 4, kind: output, shape index: {1}]
  %5 = xla_tuple %s3, %s4
  %s6 = sld [smem:[#allocation0]]
  $region53: #{attention_qk_forward.1} parent=0
    _
  %s8 = ssub.s32 1, %s6
  %s9 = scalar_select 0, %s8, %s6
  loop: start=0, step=1, limit=4
  $region2: #{attention_qk_forward.1} parent=0 // loop_pre_header
    _
  $region3: #{attention_qk_forward.1} parent=0 // loop_header
    %s11 = sphi 0, %s15
    %p12 = scmp.ge.s32.totalorder %s11, 4
    %s18 = sphi 0, %s30
    %s19 = sphi 0, %s26
    %s20 = sphi 0, %s18
    %s21 = sphi 0, %s19
    %s22 = sphi 0, %s20
    %s23 = sphi 0, %s21
    %s35 = sphi 0, %s37
    %s38 = sphi 0, %s35
    %s39 = sphi 0, %s38
    %s55 = sphi 0, %s39
    %s59 = sphi 0, %s59
    %s61 = sphi 0, %s59
    %s62 = sphi 0, %s61
    %s76 = sphi 0, %s62
    %s80 = sphi 0, %s80
    %s82 = sphi 0, %s80
    %s83 = sphi 0, %s82
    %s97 = sphi 0, %s83
    %s105 = sphi 0, %s107
    %s108 = sphi 0, %s105
    %s109 = sphi 0, %s108
    %s125 = sphi 0, %s109
    %s133 = sphi 0, %s135
    %s136 = sphi 0, %s133
    %s137 = sphi 0, %s136
    %s153 = sphi 0, %s137
  $region4: #{attention_qk_forward.1} parent=0 // loop_header_branch
    %14 = sbr.rel (%p12) target = $region8
  $region5: #{attention_qk_forward.1} parent=0 // loop_body
    %s16 = ssub.s32 %s11, 1
    %s17 = ssub.s32 %s11, 2
    %s24 = sadd.s32 1, %s19
    %p25 = scmp.ge.s32.totalorder %s24, 1
    %s26 = scalar_select %p25, 0, %s24
    %s27 = sadd.s32 1, %s18
    %s28 = scalar_select %p25, %s27, %s18
    %p29 = scmp.ge.s32.totalorder %s28, 2
    %s30 = scalar_select %p29, 0, %s28
    %s31 = ssub.s32 %s18, %s30
    %s32 = ssub.s32 %s19, %s26
    %s33 = sor.u32 %s31, %s32
    %p34 = scmp.eq.s32.totalorder %s33, 0
    %s36 = sadd.s32 %s35, 1
    %s37 = scalar_select %p34, %s35, %s36
    %p40 = pneg %p34
    %p41 = scmp.eq.s32.totalorder %s11, 1
    %p42 = por %p40, %p41
    %p43 = scmp.ne.s32.totalorder %s35, %s38
    %p44 = scmp.eq.s32.totalorder %s11, 0
    %p45 = por %p43, %p44
    %p46 = scmp.ne.s32.totalorder %s35, %s38
    %p47 = scmp.eq.s32.totalorder %s16, 1
    %p48 = por %p46, %p47
    %p49 = scmp.ne.s32.totalorder %s38, %s39
    %p50 = scmp.eq.s32.totalorder %s16, 0
    %p51 = por %p49, %p50
    %p52 = scmp.ne.s32.totalorder %s38, %s39
    %p53 = scmp.eq.s32.totalorder %s17, 1
    %p54 = por %p52, %p53
    %p56 = scmp.ne.s32.totalorder %s39, %s55
    %p57 = scmp.eq.s32.totalorder %s17, 0
    %p58 = por %p56, %p57
    %s60 = sadd.s32 %s59, 1
    %p63 = scmp.eq.s32.totalorder %s11, 1
    %p64 = scmp.ne.s32.totalorder %s59, %s61
    %p65 = scmp.eq.s32.totalorder %s11, 0
    %p66 = por %p64, %p65
    %p67 = scmp.ne.s32.totalorder %s59, %s61
    %p68 = scmp.eq.s32.totalorder %s16, 1
    %p69 = por %p67, %p68
    %p70 = scmp.ne.s32.totalorder %s61, %s62
    %p71 = scmp.eq.s32.totalorder %s16, 0
    %p72 = por %p70, %p71
    %p73 = scmp.ne.s32.totalorder %s61, %s62
    %p74 = scmp.eq.s32.totalorder %s17, 1
    %p75 = por %p73, %p74
    %p77 = scmp.ne.s32.totalorder %s62, %s76
    %p78 = scmp.eq.s32.totalorder %s17, 0
    %p79 = por %p77, %p78
    %s81 = sadd.s32 %s80, 1
    %p84 = scmp.eq.s32.totalorder %s11, 1
    %p85 = scmp.ne.s32.totalorder %s80, %s82
    %p86 = scmp.eq.s32.totalorder %s11, 0
    %p87 = por %p85, %p86
    %p88 = scmp.ne.s32.totalorder %s80, %s82
    %p89 = scmp.eq.s32.totalorder %s16, 1
    %p90 = por %p88, %p89
    %p91 = scmp.ne.s32.totalorder %s82, %s83
    %p92 = scmp.eq.s32.totalorder %s16, 0
    %p93 = por %p91, %p92
    %p94 = scmp.ne.s32.totalorder %s82, %s83
    %p95 = scmp.eq.s32.totalorder %s17, 1
    %p96 = por %p94, %p95
    %p98 = scmp.ne.s32.totalorder %s83, %s97
    %p99 = scmp.eq.s32.totalorder %s17, 0
    %p100 = por %p98, %p99
    %s101 = ssub.s32 %s18, %s30
    %s102 = ssub.s32 %s19, %s26
    %s103 = sor.u32 %s101, %s102
    %p104 = scmp.eq.s32.totalorder %s103, 0
    %s106 = sadd.s32 %s105, 1
    %s107 = scalar_select %p104, %s105, %s106
    %p110 = pneg %p104
    %p111 = scmp.eq.s32.totalorder %s11, 1
    %p112 = por %p110, %p111
    %p113 = scmp.ne.s32.totalorder %s105, %s108
    %p114 = scmp.eq.s32.totalorder %s11, 0
    %p115 = por %p113, %p114
    %p116 = scmp.ne.s32.totalorder %s105, %s108
    %p117 = scmp.eq.s32.totalorder %s16, 1
    %p118 = por %p116, %p117
    %p119 = scmp.ne.s32.totalorder %s108, %s109
    %p120 = scmp.eq.s32.totalorder %s16, 0
    %p121 = por %p119, %p120
    %p122 = scmp.ne.s32.totalorder %s108, %s109
    %p123 = scmp.eq.s32.totalorder %s17, 1
    %p124 = por %p122, %p123
    %p126 = scmp.ne.s32.totalorder %s109, %s125
    %p127 = scmp.eq.s32.totalorder %s17, 0
    %p128 = por %p126, %p127
    %s129 = ssub.s32 %s18, %s30
    %s130 = ssub.s32 %s19, %s26
    %s131 = sor.u32 %s129, %s130
    %p132 = scmp.eq.s32.totalorder %s131, 0
    %s134 = sadd.s32 %s133, 1
    %s135 = scalar_select %p132, %s133, %s134
    %p138 = pneg %p132
    %p139 = scmp.eq.s32.totalorder %s11, 1
    %p140 = por %p138, %p139
    %p141 = scmp.ne.s32.totalorder %s133, %s136
    %p142 = scmp.eq.s32.totalorder %s11, 0
    %p143 = por %p141, %p142
    %p144 = scmp.ne.s32.totalorder %s133, %s136
    %p145 = scmp.eq.s32.totalorder %s16, 1
    %p146 = por %p144, %p145
    %p147 = scmp.ne.s32.totalorder %s136, %s137
    %p148 = scmp.eq.s32.totalorder %s16, 0
    %p149 = por %p147, %p148
    %p150 = scmp.ne.s32.totalorder %s136, %s137
    %p151 = scmp.eq.s32.totalorder %s17, 1
    %p152 = por %p150, %p151
    %p154 = scmp.ne.s32.totalorder %s137, %s153
    %p155 = scmp.eq.s32.totalorder %s17, 0
    %p156 = por %p154, %p155
    %p157 = scmp.le.s32.totalorder 1, %s11
    %p158 = scmp.lt.s32.totalorder %s11, 3
    %p159 = pnand %p157, %p158
    %p160 = pneg %p159
    // Predicated region
    $region9: #{attention_qk_forward.1} parent=5 // pred_check
      _
    $region10: #{attention_qk_forward.1} parent=5 // pred_check_branch
      %162 = sbr.rel (%p159) target = $region12
    $region11: #{attention_qk_forward.1} parent=5 // pred_region
      %s163 = ssub.s32 %s11, 1
      // Predicated region
      $region13: #{attention_qk_forward.1} parent=11 // pred_check
        %p164 = pneg %p72
      $region14: #{attention_qk_forward.1} parent=11 // pred_check_branch
        %166 = sbr.rel (%p164) target = $region16
      $region15: #{attention_qk_forward.1} parent=11 // pred_region
        _
      $region16: #{attention_qk_forward.1} parent=11 // pred_fallthru
        _
      // Predicated region
      $region17: #{attention_qk_forward.1} parent=11 // pred_check
        %p167 = pneg %p93
      $region18: #{attention_qk_forward.1} parent=11 // pred_check_branch
        %169 = sbr.rel (%p167) target = $region20
      $region19: #{attention_qk_forward.1} parent=11 // pred_region
        _
      $region20: #{attention_qk_forward.1} parent=11 // pred_fallthru
        _
    $region12: #{attention_qk_forward.1} parent=5 // pred_fallthru
      _
    %p170 = scmp.lt.s32.totalorder %s11, 2
    // Predicated region
    $region21: #{attention_qk_forward.1} parent=5 // pred_check
      %p171 = pneg %p170
    $region22: #{attention_qk_forward.1} parent=5 // pred_check_branch
      %173 = sbr.rel (%p171) target = $region24
    $region23: #{attention_qk_forward.1} parent=5 // pred_region
      // Predicated region
      $region25: #{attention_qk_forward.1} parent=23 // pred_check
        %p174 = pneg %p45
      $region26: #{attention_qk_forward.1} parent=23 // pred_check_branch
        %176 = sbr.rel (%p174) target = $region28
      $region27: #{attention_qk_forward.1} parent=23 // pred_region
        %s177 = smul.u32 2, %s19
        %p178 = scmp.lt.s32.totalorder %s18, 1
        %s179 = scalar_select %p178, %s18, 1
        %p180 = scmp.lt.s32.totalorder %s177, 1
        %s181 = scalar_select %p180, %s177, 1
        %s182 = smul.addr %s179, 2
        %s183 = sadd.s32 %s181, %s182
        %s184 = smul.addr %s183, 4
        %s185 = scalar_lea.vmem %s0, %s184
        %s186 = smul.u32 2, %s19
      $region28: #{attention_qk_forward.1} parent=23 // pred_fallthru
        _
    $region24: #{attention_qk_forward.1} parent=5 // pred_fallthru
      _
    %p187 = scmp.le.s32.totalorder 1, %s11
    %p188 = scmp.lt.s32.totalorder %s11, 3
    %p189 = pnand %p187, %p188
    %p190 = pneg %p189
    // Predicated region
    $region29: #{attention_qk_forward.1} parent=5 // pred_check
      _
    $region30: #{attention_qk_forward.1} parent=5 // pred_check_branch
      %192 = sbr.rel (%p189) target = $region32
    $region31: #{attention_qk_forward.1} parent=5 // pred_region
      %s193 = ssub.s32 %s11, 1
      %s194 = smul.u32 2, %s21
      %p195 = scmp.lt.s32.totalorder %s20, 1
      %s196 = scalar_select %p195, %s20, 1
      %p197 = scmp.lt.s32.totalorder %s194, 1
      %s198 = scalar_select %p197, %s194, 1
      %s199 = smul.addr %s196, 2
      %s200 = sadd.s32 %s198, %s199
      %s201 = smul.addr %s200, 4
      %s202 = scalar_lea.vmem %s0, %s201
      %p203 = pneg %p51
      %p204 = pneg %p48
      %p205 = pneg %p72
      %p206 = pneg %p69
      %p207 = pneg %p93
      %p208 = pneg %p90
      %p209 = pneg %p121
      %p210 = pneg %p118
      %s211 = smul.u32 2, %s21
      %p212 = scmp.lt.s32.totalorder %s20, 1
      %s213 = scalar_select %p212, %s20, 1
      %p214 = scmp.lt.s32.totalorder %s211, 1
      %s215 = scalar_select %p214, %s211, 1
      %s216 = smul.addr %s213, 32
      %s217 = sadd.s32 %s215, %s216
      %s218 = smul.addr %s217, 8
      %s219 = scalar_lea.vmem %s3, %s218
      %p220 = pneg %p149
      %p221 = pneg %p146
      %s222 = smul.u32 2, %s21
      %p223 = scmp.lt.s32.totalorder %s20, 1
      %s224 = scalar_select %p223, %s20, 1
      %p225 = scmp.lt.s32.totalorder %s222, 1
      %s226 = scalar_select %p225, %s222, 1
      %s227 = smul.addr %s224, 32
      %s228 = sadd.s32 %s226, %s227
      %s229 = smul.addr %s228, 8
      %s230 = scalar_lea.vmem %s4, %s229
      %s231 = smul.u32 2, %s21
      %p232 = scmp.lt.s32.totalorder %s20, 1
      %s233 = scalar_select %p232, %s20, 1
      %p234 = scmp.lt.s32.totalorder %s231, 1
      %s235 = scalar_select %p234, %s231, 1
      %s236 = smul.addr %s233, 2
      %s237 = sadd.s32 %s235, %s236
      %s238 = smul.addr %s237, 4
      %s239 = scalar_lea.vmem %s0, %s238
      %s240 = smul.u32 2, %s21
      %s241 = smul.u32 2, %s21
      %p242 = scmp.lt.s32.totalorder %s20, 1
      %s243 = scalar_select %p242, %s20, 1
      %p244 = scmp.lt.s32.totalorder %s241, 1
      %s245 = scalar_select %p244, %s241, 1
      %s246 = smul.addr %s243, 32
      %s247 = sadd.s32 %s245, %s246
      %s248 = smul.addr %s247, 8
      %s249 = scalar_lea.vmem %s3, %s248
      %s250 = smul.u32 2, %s21
      %s251 = smul.u32 2, %s21
      %p252 = scmp.lt.s32.totalorder %s20, 1
      %s253 = scalar_select %p252, %s20, 1
      %p254 = scmp.lt.s32.totalorder %s251, 1
      %s255 = scalar_select %p254, %s251, 1
      %s256 = smul.addr %s253, 32
      %s257 = sadd.s32 %s255, %s256
      %s258 = smul.addr %s257, 8
      %s259 = scalar_lea.vmem %s4, %s258
      %s260 = smul.u32 2, %s21
      %v261 = vld [vmem:[%s239] sm:$0xff]
      %v262 = vld [vmem:[%s1] sm:$0xff]
      %v263 = vld [vmem:[%s1 + $0x8] sm:$0xff]
      %v264 = vld [vmem:[%s1 + $0x10] sm:$0xff]
      %v265 = vld [vmem:[%s1 + $0x18] sm:$0xff]
      %v266 = vld [vmem:[%s1 + $0x20] sm:$0xff]
      %v267 = vld [vmem:[%s1 + $0x28] sm:$0xff]
      %v268 = vld [vmem:[%s1 + $0x30] sm:$0xff]
      %v269 = vld [vmem:[%s1 + $0x38] sm:$0xff]
      %v270 = vld [vmem:[%s1 + $0x40] sm:$0xff]
      %v271 = vld [vmem:[%s1 + $0x48] sm:$0xff]
      %v272 = vld [vmem:[%s1 + $0x50] sm:$0xff]
      %v273 = vld [vmem:[%s1 + $0x58] sm:$0xff]
      %v274 = vld [vmem:[%s1 + $0x60] sm:$0xff]
      %v275 = vld [vmem:[%s1 + $0x68] sm:$0xff]
      %v276 = vld [vmem:[%s1 + $0x70] sm:$0xff]
      %v277 = vld [vmem:[%s1 + $0x78] sm:$0xff]
      %v278 = vld [vmem:[%s2] sm:$0xff]
      %v279 = vld [vmem:[%s2 + $0x8] sm:$0xff]
      %v280 = vld [vmem:[%s2 + $0x10] sm:$0xff]
      %v281 = vld [vmem:[%s2 + $0x18] sm:$0xff]
      %v282 = vld [vmem:[%s2 + $0x20] sm:$0xff]
      %v283 = vld [vmem:[%s2 + $0x28] sm:$0xff]
      %v284 = vld [vmem:[%s2 + $0x30] sm:$0xff]
      %v285 = vld [vmem:[%s2 + $0x38] sm:$0xff]
      %v286 = vld [vmem:[%s2 + $0x40] sm:$0xff]
      %v287 = vld [vmem:[%s2 + $0x48] sm:$0xff]
      %v288 = vld [vmem:[%s2 + $0x50] sm:$0xff]
      %v289 = vld [vmem:[%s2 + $0x58] sm:$0xff]
      %v290 = vld [vmem:[%s2 + $0x60] sm:$0xff]
      %v291 = vld [vmem:[%s2 + $0x68] sm:$0xff]
      %v292 = vld [vmem:[%s2 + $0x70] sm:$0xff]
      %v293 = vld [vmem:[%s2 + $0x78] sm:$0xff]
      %295 = vset.pattern.permute.xlu0 0
      %296 = vperm.xlu0 %295, %v262
      %v297 = vpop.permute.xlu0 %296
      %300 = vset.pattern.permute.xlu0 0
      %301 = vperm.xlu0 %300, %v263
      %v302 = vpop.permute.xlu0 %301
      %305 = vset.pattern.permute.xlu0 0
      %306 = vperm.xlu0 %305, %v264
      %v307 = vpop.permute.xlu0 %306
      %310 = vset.pattern.permute.xlu0 0
      %311 = vperm.xlu0 %310, %v265
      %v312 = vpop.permute.xlu0 %311
      %315 = vset.pattern.permute.xlu0 0
      %316 = vperm.xlu0 %315, %v266
      %v317 = vpop.permute.xlu0 %316
      %320 = vset.pattern.permute.xlu0 0
      %321 = vperm.xlu0 %320, %v267
      %v322 = vpop.permute.xlu0 %321
      %325 = vset.pattern.permute.xlu0 0
      %326 = vperm.xlu0 %325, %v268
      %v327 = vpop.permute.xlu0 %326
      %330 = vset.pattern.permute.xlu0 0
      %331 = vperm.xlu0 %330, %v269
      %v332 = vpop.permute.xlu0 %331
      %335 = vset.pattern.permute.xlu0 0
      %336 = vperm.xlu0 %335, %v270
      %v337 = vpop.permute.xlu0 %336
      %340 = vset.pattern.permute.xlu0 0
      %341 = vperm.xlu0 %340, %v271
      %v342 = vpop.permute.xlu0 %341
      %345 = vset.pattern.permute.xlu0 0
      %346 = vperm.xlu0 %345, %v272
      %v347 = vpop.permute.xlu0 %346
      %350 = vset.pattern.permute.xlu0 0
      %351 = vperm.xlu0 %350, %v273
      %v352 = vpop.permute.xlu0 %351
      %355 = vset.pattern.permute.xlu0 0
      %356 = vperm.xlu0 %355, %v274
      %v357 = vpop.permute.xlu0 %356
      %360 = vset.pattern.permute.xlu0 0
      %361 = vperm.xlu0 %360, %v275
      %v362 = vpop.permute.xlu0 %361
      %365 = vset.pattern.permute.xlu0 0
      %366 = vperm.xlu0 %365, %v276
      %v367 = vpop.permute.xlu0 %366
      %370 = vset.pattern.permute.xlu0 0
      %371 = vperm.xlu0 %370, %v277
      %v372 = vpop.permute.xlu0 %371
      %v375 = vlaneseq
      %v376 = vshrl.u32 %v375, 7
      %v377 = vsub.s32 0, %v376
      %v378 = vrot.slane %v261, %v377
      %v379 = vlaneseq
      %v380 = vshrl.u32 %v379, 7
      %v381 = vsub.s32 4, %v380
      %v382 = vrot.slane %v261, %v381
      %v385 = vlaneseq
      %v386 = vshrl.u32 %v385, 7
      %v387 = vsub.s32 0, %v386
      %v388 = vrot.slane %v378, %v387
      %v389 = vlaneseq
      %v390 = vshrl.u32 %v389, 7
      %v391 = vsub.s32 0, %v390
      %v392 = vrot.slane %v382, %v391
      %v393 = vmul.f32 %v297, %v388
      %v394 = vmul.f32 %v297, %v392
      %v395 = vmul.f32 %v302, %v388
      %v396 = vmul.f32 %v302, %v392
      %v397 = vmul.f32 %v307, %v388
      %v398 = vmul.f32 %v307, %v392
      %v399 = vmul.f32 %v312, %v388
      %v400 = vmul.f32 %v312, %v392
      %v401 = vmul.f32 %v317, %v388
      %v402 = vmul.f32 %v317, %v392
      %v403 = vmul.f32 %v322, %v388
      %v404 = vmul.f32 %v322, %v392
      %v405 = vmul.f32 %v327, %v388
      %v406 = vmul.f32 %v327, %v392
      %v407 = vmul.f32 %v332, %v388
      %v408 = vmul.f32 %v332, %v392
      %v409 = vmul.f32 %v337, %v388
      %v410 = vmul.f32 %v337, %v392
      %v411 = vmul.f32 %v342, %v388
      %v412 = vmul.f32 %v342, %v392
      %v413 = vmul.f32 %v347, %v388
      %v414 = vmul.f32 %v347, %v392
      %v415 = vmul.f32 %v352, %v388
      %v416 = vmul.f32 %v352, %v392
      %v417 = vmul.f32 %v357, %v388
      %v418 = vmul.f32 %v357, %v392
      %v419 = vmul.f32 %v362, %v388
      %v420 = vmul.f32 %v362, %v392
      %v421 = vmul.f32 %v367, %v388
      %v422 = vmul.f32 %v367, %v392
      %v423 = vmul.f32 %v372, %v388
      %v424 = vmul.f32 %v372, %v392
      %426 = vset.pattern.permute.xlu0 0
      %427 = vperm.xlu0 %426, %v278
      %v428 = vpop.permute.xlu0 %427
      %431 = vset.pattern.permute.xlu0 0
      %432 = vperm.xlu0 %431, %v279
      %v433 = vpop.permute.xlu0 %432
      %436 = vset.pattern.permute.xlu0 0
      %437 = vperm.xlu0 %436, %v280
      %v438 = vpop.permute.xlu0 %437
      %441 = vset.pattern.permute.xlu0 0
      %442 = vperm.xlu0 %441, %v281
      %v443 = vpop.permute.xlu0 %442
      %446 = vset.pattern.permute.xlu0 0
      %447 = vperm.xlu0 %446, %v282
      %v448 = vpop.permute.xlu0 %447
      %451 = vset.pattern.permute.xlu0 0
      %452 = vperm.xlu0 %451, %v283
      %v453 = vpop.permute.xlu0 %452
      %456 = vset.pattern.permute.xlu0 0
      %457 = vperm.xlu0 %456, %v284
      %v458 = vpop.permute.xlu0 %457
      %461 = vset.pattern.permute.xlu0 0
      %462 = vperm.xlu0 %461, %v285
      %v463 = vpop.permute.xlu0 %462
      %466 = vset.pattern.permute.xlu0 0
      %467 = vperm.xlu0 %466, %v286
      %v468 = vpop.permute.xlu0 %467
      %471 = vset.pattern.permute.xlu0 0
      %472 = vperm.xlu0 %471, %v287
      %v473 = vpop.permute.xlu0 %472
      %476 = vset.pattern.permute.xlu0 0
      %477 = vperm.xlu0 %476, %v288
      %v478 = vpop.permute.xlu0 %477
      %481 = vset.pattern.permute.xlu0 0
      %482 = vperm.xlu0 %481, %v289
      %v483 = vpop.permute.xlu0 %482
      %486 = vset.pattern.permute.xlu0 0
      %487 = vperm.xlu0 %486, %v290
      %v488 = vpop.permute.xlu0 %487
      %491 = vset.pattern.permute.xlu0 0
      %492 = vperm.xlu0 %491, %v291
      %v493 = vpop.permute.xlu0 %492
      %496 = vset.pattern.permute.xlu0 0
      %497 = vperm.xlu0 %496, %v292
      %v498 = vpop.permute.xlu0 %497
      %501 = vset.pattern.permute.xlu0 0
      %502 = vperm.xlu0 %501, %v293
      %v503 = vpop.permute.xlu0 %502
      %v505 = vmul.f32 %v428, %v388
      %v506 = vmul.f32 %v428, %v392
      %v507 = vmul.f32 %v433, %v388
      %v508 = vmul.f32 %v433, %v392
      %v509 = vmul.f32 %v438, %v388
      %v510 = vmul.f32 %v438, %v392
      %v511 = vmul.f32 %v443, %v388
      %v512 = vmul.f32 %v443, %v392
      %v513 = vmul.f32 %v448, %v388
      %v514 = vmul.f32 %v448, %v392
      %v515 = vmul.f32 %v453, %v388
      %v516 = vmul.f32 %v453, %v392
      %v517 = vmul.f32 %v458, %v388
      %v518 = vmul.f32 %v458, %v392
      %v519 = vmul.f32 %v463, %v388
      %v520 = vmul.f32 %v463, %v392
      %v521 = vmul.f32 %v468, %v388
      %v522 = vmul.f32 %v468, %v392
      %v523 = vmul.f32 %v473, %v388
      %v524 = vmul.f32 %v473, %v392
      %v525 = vmul.f32 %v478, %v388
      %v526 = vmul.f32 %v478, %v392
      %v527 = vmul.f32 %v483, %v388
      %v528 = vmul.f32 %v483, %v392
      %v529 = vmul.f32 %v488, %v388
      %v530 = vmul.f32 %v488, %v392
      %v531 = vmul.f32 %v493, %v388
      %v532 = vmul.f32 %v493, %v392
      %v533 = vmul.f32 %v498, %v388
      %v534 = vmul.f32 %v498, %v392
      %v535 = vmul.f32 %v503, %v388
      %v536 = vmul.f32 %v503, %v392
      %537 = vset.pattern.permute.xlu0 1
      %538 = vperm.xlu0 %537, %v262
      %v539 = vpop.permute.xlu0 %538
      %541 = vset.pattern.permute.xlu0 1
      %542 = vperm.xlu0 %541, %v263
      %v543 = vpop.permute.xlu0 %542
      %545 = vset.pattern.permute.xlu0 1
      %546 = vperm.xlu0 %545, %v264
      %v547 = vpop.permute.xlu0 %546
      %549 = vset.pattern.permute.xlu0 1
      %550 = vperm.xlu0 %549, %v265
      %v551 = vpop.permute.xlu0 %550
      %553 = vset.pattern.permute.xlu0 1
      %554 = vperm.xlu0 %553, %v266
      %v555 = vpop.permute.xlu0 %554
      %557 = vset.pattern.permute.xlu0 1
      %558 = vperm.xlu0 %557, %v267
      %v559 = vpop.permute.xlu0 %558
      %561 = vset.pattern.permute.xlu0 1
      %562 = vperm.xlu0 %561, %v268
      %v563 = vpop.permute.xlu0 %562
      %565 = vset.pattern.permute.xlu0 1
      %566 = vperm.xlu0 %565, %v269
      %v567 = vpop.permute.xlu0 %566
      %569 = vset.pattern.permute.xlu0 1
      %570 = vperm.xlu0 %569, %v270
      %v571 = vpop.permute.xlu0 %570
      %573 = vset.pattern.permute.xlu0 1
      %574 = vperm.xlu0 %573, %v271
      %v575 = vpop.permute.xlu0 %574
      %577 = vset.pattern.permute.xlu0 1
      %578 = vperm.xlu0 %577, %v272
      %v579 = vpop.permute.xlu0 %578
      %581 = vset.pattern.permute.xlu0 1
      %582 = vperm.xlu0 %581, %v273
      %v583 = vpop.permute.xlu0 %582
      %585 = vset.pattern.permute.xlu0 1
      %586 = vperm.xlu0 %585, %v274
      %v587 = vpop.permute.xlu0 %586
      %589 = vset.pattern.permute.xlu0 1
      %590 = vperm.xlu0 %589, %v275
      %v591 = vpop.permute.xlu0 %590
      %593 = vset.pattern.permute.xlu0 1
      %594 = vperm.xlu0 %593, %v276
      %v595 = vpop.permute.xlu0 %594
      %597 = vset.pattern.permute.xlu0 1
      %598 = vperm.xlu0 %597, %v277
      %v599 = vpop.permute.xlu0 %598
      %v601 = vlaneseq
      %v602 = vshrl.u32 %v601, 7
      %v603 = vsub.s32 1, %v602
      %v604 = vrot.slane %v261, %v603
      %v605 = vlaneseq
      %v606 = vshrl.u32 %v605, 7
      %v607 = vsub.s32 5, %v606
      %v608 = vrot.slane %v261, %v607
      %v611 = vlaneseq
      %v612 = vshrl.u32 %v611, 7
      %v613 = vsub.s32 1, %v612
      %v614 = vrot.slane %v604, %v613
      %v615 = vlaneseq
      %v616 = vshrl.u32 %v615, 7
      %v617 = vsub.s32 1, %v616
      %v618 = vrot.slane %v608, %v617
      %v619 = vmul.f32 %v539, %v614
      %v620 = vmul.f32 %v539, %v618
      %v621 = vmul.f32 %v543, %v614
      %v622 = vmul.f32 %v543, %v618
      %v623 = vmul.f32 %v547, %v614
      %v624 = vmul.f32 %v547, %v618
      %v625 = vmul.f32 %v551, %v614
      %v626 = vmul.f32 %v551, %v618
      %v627 = vmul.f32 %v555, %v614
      %v628 = vmul.f32 %v555, %v618
      %v629 = vmul.f32 %v559, %v614
      %v630 = vmul.f32 %v559, %v618
      %v631 = vmul.f32 %v563, %v614
      %v632 = vmul.f32 %v563, %v618
      %v633 = vmul.f32 %v567, %v614
      %v634 = vmul.f32 %v567, %v618
      %v635 = vmul.f32 %v571, %v614
      %v636 = vmul.f32 %v571, %v618
      %v637 = vmul.f32 %v575, %v614
      %v638 = vmul.f32 %v575, %v618
      %v639 = vmul.f32 %v579, %v614
      %v640 = vmul.f32 %v579, %v618
      %v641 = vmul.f32 %v583, %v614
      %v642 = vmul.f32 %v583, %v618
      %v643 = vmul.f32 %v587, %v614
      %v644 = vmul.f32 %v587, %v618
      %v645 = vmul.f32 %v591, %v614
      %v646 = vmul.f32 %v591, %v618
      %v647 = vmul.f32 %v595, %v614
      %v648 = vmul.f32 %v595, %v618
      %v649 = vmul.f32 %v599, %v614
      %v650 = vmul.f32 %v599, %v618
      %v651 = vadd.f32 %v393, %v619
      %v652 = vadd.f32 %v394, %v620
      %v653 = vadd.f32 %v395, %v621
      %v654 = vadd.f32 %v396, %v622
      %v655 = vadd.f32 %v397, %v623
      %v656 = vadd.f32 %v398, %v624
      %v657 = vadd.f32 %v399, %v625
      %v658 = vadd.f32 %v400, %v626
      %v659 = vadd.f32 %v401, %v627
      %v660 = vadd.f32 %v402, %v628
      %v661 = vadd.f32 %v403, %v629
      %v662 = vadd.f32 %v404, %v630
      %v663 = vadd.f32 %v405, %v631
      %v664 = vadd.f32 %v406, %v632
      %v665 = vadd.f32 %v407, %v633
      %v666 = vadd.f32 %v408, %v634
      %v667 = vadd.f32 %v409, %v635
      %v668 = vadd.f32 %v410, %v636
      %v669 = vadd.f32 %v411, %v637
      %v670 = vadd.f32 %v412, %v638
      %v671 = vadd.f32 %v413, %v639
      %v672 = vadd.f32 %v414, %v640
      %v673 = vadd.f32 %v415, %v641
      %v674 = vadd.f32 %v416, %v642
      %v675 = vadd.f32 %v417, %v643
      %v676 = vadd.f32 %v418, %v644
      %v677 = vadd.f32 %v419, %v645
      %v678 = vadd.f32 %v420, %v646
      %v679 = vadd.f32 %v421, %v647
      %v680 = vadd.f32 %v422, %v648
      %v681 = vadd.f32 %v423, %v649
      %v682 = vadd.f32 %v424, %v650
      %683 = vset.pattern.permute.xlu0 1
      %684 = vperm.xlu0 %683, %v278
      %v685 = vpop.permute.xlu0 %684
      %687 = vset.pattern.permute.xlu0 1
      %688 = vperm.xlu0 %687, %v279
      %v689 = vpop.permute.xlu0 %688
      %691 = vset.pattern.permute.xlu0 1
      %692 = vperm.xlu0 %691, %v280
      %v693 = vpop.permute.xlu0 %692
      %695 = vset.pattern.permute.xlu0 1
      %696 = vperm.xlu0 %695, %v281
      %v697 = vpop.permute.xlu0 %696
      %699 = vset.pattern.permute.xlu0 1
      %700 = vperm.xlu0 %699, %v282
      %v701 = vpop.permute.xlu0 %700
      %703 = vset.pattern.permute.xlu0 1
      %704 = vperm.xlu0 %703, %v283
      %v705 = vpop.permute.xlu0 %704
      %707 = vset.pattern.permute.xlu0 1
      %708 = vperm.xlu0 %707, %v284
      %v709 = vpop.permute.xlu0 %708
      %711 = vset.pattern.permute.xlu0 1
      %712 = vperm.xlu0 %711, %v285
      %v713 = vpop.permute.xlu0 %712
      %715 = vset.pattern.permute.xlu0 1
      %716 = vperm.xlu0 %715, %v286
      %v717 = vpop.permute.xlu0 %716
      %719 = vset.pattern.permute.xlu0 1
      %720 = vperm.xlu0 %719, %v287
      %v721 = vpop.permute.xlu0 %720
      %723 = vset.pattern.permute.xlu0 1
      %724 = vperm.xlu0 %723, %v288
      %v725 = vpop.permute.xlu0 %724
      %727 = vset.pattern.permute.xlu0 1
      %728 = vperm.xlu0 %727, %v289
      %v729 = vpop.permute.xlu0 %728
      %731 = vset.pattern.permute.xlu0 1
      %732 = vperm.xlu0 %731, %v290
      %v733 = vpop.permute.xlu0 %732
      %735 = vset.pattern.permute.xlu0 1
      %736 = vperm.xlu0 %735, %v291
      %v737 = vpop.permute.xlu0 %736
      %739 = vset.pattern.permute.xlu0 1
      %740 = vperm.xlu0 %739, %v292
      %v741 = vpop.permute.xlu0 %740
      %743 = vset.pattern.permute.xlu0 1
      %744 = vperm.xlu0 %743, %v293
      %v745 = vpop.permute.xlu0 %744
      %v747 = vmul.f32 %v685, %v614
      %v748 = vmul.f32 %v685, %v618
      %v749 = vmul.f32 %v689, %v614
      %v750 = vmul.f32 %v689, %v618
      %v751 = vmul.f32 %v693, %v614
      %v752 = vmul.f32 %v693, %v618
      %v753 = vmul.f32 %v697, %v614
      %v754 = vmul.f32 %v697, %v618
      %v755 = vmul.f32 %v701, %v614
      %v756 = vmul.f32 %v701, %v618
      %v757 = vmul.f32 %v705, %v614
      %v758 = vmul.f32 %v705, %v618
      %v759 = vmul.f32 %v709, %v614
      %v760 = vmul.f32 %v709, %v618
      %v761 = vmul.f32 %v713, %v614
      %v762 = vmul.f32 %v713, %v618
      %v763 = vmul.f32 %v717, %v614
      %v764 = vmul.f32 %v717, %v618
      %v765 = vmul.f32 %v721, %v614
      %v766 = vmul.f32 %v721, %v618
      %v767 = vmul.f32 %v725, %v614
      %v768 = vmul.f32 %v725, %v618
      %v769 = vmul.f32 %v729, %v614
      %v770 = vmul.f32 %v729, %v618
      %v771 = vmul.f32 %v733, %v614
      %v772 = vmul.f32 %v733, %v618
      %v773 = vmul.f32 %v737, %v614
      %v774 = vmul.f32 %v737, %v618
      %v775 = vmul.f32 %v741, %v614
      %v776 = vmul.f32 %v741, %v618
      %v777 = vmul.f32 %v745, %v614
      %v778 = vmul.f32 %v745, %v618
      %v779 = vadd.f32 %v505, %v747
      %v780 = vadd.f32 %v506, %v748
      %v781 = vadd.f32 %v507, %v749
      %v782 = vadd.f32 %v508, %v750
      %v783 = vadd.f32 %v509, %v751
      %v784 = vadd.f32 %v510, %v752
      %v785 = vadd.f32 %v511, %v753
      %v786 = vadd.f32 %v512, %v754
      %v787 = vadd.f32 %v513, %v755
      %v788 = vadd.f32 %v514, %v756
      %v789 = vadd.f32 %v515, %v757
      %v790 = vadd.f32 %v516, %v758
      %v791 = vadd.f32 %v517, %v759
      %v792 = vadd.f32 %v518, %v760
      %v793 = vadd.f32 %v519, %v761
      %v794 = vadd.f32 %v520, %v762
      %v795 = vadd.f32 %v521, %v763
      %v796 = vadd.f32 %v522, %v764
      %v797 = vadd.f32 %v523, %v765
      %v798 = vadd.f32 %v524, %v766
      %v799 = vadd.f32 %v525, %v767
      %v800 = vadd.f32 %v526, %v768
      %v801 = vadd.f32 %v527, %v769
      %v802 = vadd.f32 %v528, %v770
      %v803 = vadd.f32 %v529, %v771
      %v804 = vadd.f32 %v530, %v772
      %v805 = vadd.f32 %v531, %v773
      %v806 = vadd.f32 %v532, %v774
      %v807 = vadd.f32 %v533, %v775
      %v808 = vadd.f32 %v534, %v776
      %v809 = vadd.f32 %v535, %v777
      %v810 = vadd.f32 %v536, %v778
      %811 = vset.pattern.permute.xlu0 2
      %812 = vperm.xlu0 %811, %v262
      %v813 = vpop.permute.xlu0 %812
      %815 = vset.pattern.permute.xlu0 2
      %816 = vperm.xlu0 %815, %v263
      %v817 = vpop.permute.xlu0 %816
      %819 = vset.pattern.permute.xlu0 2
      %820 = vperm.xlu0 %819, %v264
      %v821 = vpop.permute.xlu0 %820
      %823 = vset.pattern.permute.xlu0 2
      %824 = vperm.xlu0 %823, %v265
      %v825 = vpop.permute.xlu0 %824
      %827 = vset.pattern.permute.xlu0 2
      %828 = vperm.xlu0 %827, %v266
      %v829 = vpop.permute.xlu0 %828
      %831 = vset.pattern.permute.xlu0 2
      %832 = vperm.xlu0 %831, %v267
      %v833 = vpop.permute.xlu0 %832
      %835 = vset.pattern.permute.xlu0 2
      %836 = vperm.xlu0 %835, %v268
      %v837 = vpop.permute.xlu0 %836
      %839 = vset.pattern.permute.xlu0 2
      %840 = vperm.xlu0 %839, %v269
      %v841 = vpop.permute.xlu0 %840
      %843 = vset.pattern.permute.xlu0 2
      %844 = vperm.xlu0 %843, %v270
      %v845 = vpop.permute.xlu0 %844
      %847 = vset.pattern.permute.xlu0 2
      %848 = vperm.xlu0 %847, %v271
      %v849 = vpop.permute.xlu0 %848
      %851 = vset.pattern.permute.xlu0 2
      %852 = vperm.xlu0 %851, %v272
      %v853 = vpop.permute.xlu0 %852
      %855 = vset.pattern.permute.xlu0 2
      %856 = vperm.xlu0 %855, %v273
      %v857 = vpop.permute.xlu0 %856
      %859 = vset.pattern.permute.xlu0 2
      %860 = vperm.xlu0 %859, %v274
      %v861 = vpop.permute.xlu0 %860
      %863 = vset.pattern.permute.xlu0 2
      %864 = vperm.xlu0 %863, %v275
      %v865 = vpop.permute.xlu0 %864
      %867 = vset.pattern.permute.xlu0 2
      %868 = vperm.xlu0 %867, %v276
      %v869 = vpop.permute.xlu0 %868
      %871 = vset.pattern.permute.xlu0 2
      %872 = vperm.xlu0 %871, %v277
      %v873 = vpop.permute.xlu0 %872
      %v875 = vlaneseq
      %v876 = vshrl.u32 %v875, 7
      %v877 = vsub.s32 2, %v876
      %v878 = vrot.slane %v261, %v877
      %v879 = vlaneseq
      %v880 = vshrl.u32 %v879, 7
      %v881 = vsub.s32 6, %v880
      %v882 = vrot.slane %v261, %v881
      %v885 = vlaneseq
      %v886 = vshrl.u32 %v885, 7
      %v887 = vsub.s32 2, %v886
      %v888 = vrot.slane %v878, %v887
      %v889 = vlaneseq
      %v890 = vshrl.u32 %v889, 7
      %v891 = vsub.s32 2, %v890
      %v892 = vrot.slane %v882, %v891
      %v893 = vmul.f32 %v813, %v888
      %v894 = vmul.f32 %v813, %v892
      %v895 = vmul.f32 %v817, %v888
      %v896 = vmul.f32 %v817, %v892
      %v897 = vmul.f32 %v821, %v888
      %v898 = vmul.f32 %v821, %v892
      %v899 = vmul.f32 %v825, %v888
      %v900 = vmul.f32 %v825, %v892
      %v901 = vmul.f32 %v829, %v888
      %v902 = vmul.f32 %v829, %v892
      %v903 = vmul.f32 %v833, %v888
      %v904 = vmul.f32 %v833, %v892
      %v905 = vmul.f32 %v837, %v888
      %v906 = vmul.f32 %v837, %v892
      %v907 = vmul.f32 %v841, %v888
      %v908 = vmul.f32 %v841, %v892
      %v909 = vmul.f32 %v845, %v888
      %v910 = vmul.f32 %v845, %v892
      %v911 = vmul.f32 %v849, %v888
      %v912 = vmul.f32 %v849, %v892
      %v913 = vmul.f32 %v853, %v888
      %v914 = vmul.f32 %v853, %v892
      %v915 = vmul.f32 %v857, %v888
      %v916 = vmul.f32 %v857, %v892
      %v917 = vmul.f32 %v861, %v888
      %v918 = vmul.f32 %v861, %v892
      %v919 = vmul.f32 %v865, %v888
      %v920 = vmul.f32 %v865, %v892
      %v921 = vmul.f32 %v869, %v888
      %v922 = vmul.f32 %v869, %v892
      %v923 = vmul.f32 %v873, %v888
      %v924 = vmul.f32 %v873, %v892
      %v925 = vadd.f32 %v651, %v893
      %v926 = vadd.f32 %v652, %v894
      %v927 = vadd.f32 %v653, %v895
      %v928 = vadd.f32 %v654, %v896
      %v929 = vadd.f32 %v655, %v897
      %v930 = vadd.f32 %v656, %v898
      %v931 = vadd.f32 %v657, %v899
      %v932 = vadd.f32 %v658, %v900
      %v933 = vadd.f32 %v659, %v901
      %v934 = vadd.f32 %v660, %v902
      %v935 = vadd.f32 %v661, %v903
      %v936 = vadd.f32 %v662, %v904
      %v937 = vadd.f32 %v663, %v905
      %v938 = vadd.f32 %v664, %v906
      %v939 = vadd.f32 %v665, %v907
      %v940 = vadd.f32 %v666, %v908
      %v941 = vadd.f32 %v667, %v909
      %v942 = vadd.f32 %v668, %v910
      %v943 = vadd.f32 %v669, %v911
      %v944 = vadd.f32 %v670, %v912
      %v945 = vadd.f32 %v671, %v913
      %v946 = vadd.f32 %v672, %v914
      %v947 = vadd.f32 %v673, %v915
      %v948 = vadd.f32 %v674, %v916
      %v949 = vadd.f32 %v675, %v917
      %v950 = vadd.f32 %v676, %v918
      %v951 = vadd.f32 %v677, %v919
      %v952 = vadd.f32 %v678, %v920
      %v953 = vadd.f32 %v679, %v921
      %v954 = vadd.f32 %v680, %v922
      %v955 = vadd.f32 %v681, %v923
      %v956 = vadd.f32 %v682, %v924
      %957 = vset.pattern.permute.xlu0 2
      %958 = vperm.xlu0 %957, %v278
      %v959 = vpop.permute.xlu0 %958
      %961 = vset.pattern.permute.xlu0 2
      %962 = vperm.xlu0 %961, %v279
      %v963 = vpop.permute.xlu0 %962
      %965 = vset.pattern.permute.xlu0 2
      %966 = vperm.xlu0 %965, %v280
      %v967 = vpop.permute.xlu0 %966
      %969 = vset.pattern.permute.xlu0 2
      %970 = vperm.xlu0 %969, %v281
      %v971 = vpop.permute.xlu0 %970
      %973 = vset.pattern.permute.xlu0 2
      %974 = vperm.xlu0 %973, %v282
      %v975 = vpop.permute.xlu0 %974
      %977 = vset.pattern.permute.xlu0 2
      %978 = vperm.xlu0 %977, %v283
      %v979 = vpop.permute.xlu0 %978
      %981 = vset.pattern.permute.xlu0 2
      %982 = vperm.xlu0 %981, %v284
      %v983 = vpop.permute.xlu0 %982
      %985 = vset.pattern.permute.xlu0 2
      %986 = vperm.xlu0 %985, %v285
      %v987 = vpop.permute.xlu0 %986
      %989 = vset.pattern.permute.xlu0 2
      %990 = vperm.xlu0 %989, %v286
      %v991 = vpop.permute.xlu0 %990
      %993 = vset.pattern.permute.xlu0 2
      %994 = vperm.xlu0 %993, %v287
      %v995 = vpop.permute.xlu0 %994
      %997 = vset.pattern.permute.xlu0 2
      %998 = vperm.xlu0 %997, %v288
      %v999 = vpop.permute.xlu0 %998
      %1001 = vset.pattern.permute.xlu0 2
      %1002 = vperm.xlu0 %1001, %v289
      %v1003 = vpop.permute.xlu0 %1002
      %1005 = vset.pattern.permute.xlu0 2
      %1006 = vperm.xlu0 %1005, %v290
      %v1007 = vpop.permute.xlu0 %1006
      %1009 = vset.pattern.permute.xlu0 2
      %1010 = vperm.xlu0 %1009, %v291
      %v1011 = vpop.permute.xlu0 %1010
      %1013 = vset.pattern.permute.xlu0 2
      %1014 = vperm.xlu0 %1013, %v292
      %v1015 = vpop.permute.xlu0 %1014
      %1017 = vset.pattern.permute.xlu0 2
      %1018 = vperm.xlu0 %1017, %v293
      %v1019 = vpop.permute.xlu0 %1018
      %v1021 = vmul.f32 %v959, %v888
      %v1022 = vmul.f32 %v959, %v892
      %v1023 = vmul.f32 %v963, %v888
      %v1024 = vmul.f32 %v963, %v892
      %v1025 = vmul.f32 %v967, %v888
      %v1026 = vmul.f32 %v967, %v892
      %v1027 = vmul.f32 %v971, %v888
      %v1028 = vmul.f32 %v971, %v892
      %v1029 = vmul.f32 %v975, %v888
      %v1030 = vmul.f32 %v975, %v892
      %v1031 = vmul.f32 %v979, %v888
      %v1032 = vmul.f32 %v979, %v892
      %v1033 = vmul.f32 %v983, %v888
      %v1034 = vmul.f32 %v983, %v892
      %v1035 = vmul.f32 %v987, %v888
      %v1036 = vmul.f32 %v987, %v892
      %v1037 = vmul.f32 %v991, %v888
      %v1038 = vmul.f32 %v991, %v892
      %v1039 = vmul.f32 %v995, %v888
      %v1040 = vmul.f32 %v995, %v892
      %v1041 = vmul.f32 %v999, %v888
      %v1042 = vmul.f32 %v999, %v892
      %v1043 = vmul.f32 %v1003, %v888
      %v1044 = vmul.f32 %v1003, %v892
      %v1045 = vmul.f32 %v1007, %v888
      %v1046 = vmul.f32 %v1007, %v892
      %v1047 = vmul.f32 %v1011, %v888
      %v1048 = vmul.f32 %v1011, %v892
      %v1049 = vmul.f32 %v1015, %v888
      %v1050 = vmul.f32 %v1015, %v892
      %v1051 = vmul.f32 %v1019, %v888
      %v1052 = vmul.f32 %v1019, %v892
      %v1053 = vadd.f32 %v779, %v1021
      %v1054 = vadd.f32 %v780, %v1022
      %v1055 = vadd.f32 %v781, %v1023
      %v1056 = vadd.f32 %v782, %v1024
      %v1057 = vadd.f32 %v783, %v1025
      %v1058 = vadd.f32 %v784, %v1026
      %v1059 = vadd.f32 %v785, %v1027
      %v1060 = vadd.f32 %v786, %v1028
      %v1061 = vadd.f32 %v787, %v1029
      %v1062 = vadd.f32 %v788, %v1030
      %v1063 = vadd.f32 %v789, %v1031
      %v1064 = vadd.f32 %v790, %v1032
      %v1065 = vadd.f32 %v791, %v1033
      %v1066 = vadd.f32 %v792, %v1034
      %v1067 = vadd.f32 %v793, %v1035
      %v1068 = vadd.f32 %v794, %v1036
      %v1069 = vadd.f32 %v795, %v1037
      %v1070 = vadd.f32 %v796, %v1038
      %v1071 = vadd.f32 %v797, %v1039
      %v1072 = vadd.f32 %v798, %v1040
      %v1073 = vadd.f32 %v799, %v1041
      %v1074 = vadd.f32 %v800, %v1042
      %v1075 = vadd.f32 %v801, %v1043
      %v1076 = vadd.f32 %v802, %v1044
      %v1077 = vadd.f32 %v803, %v1045
      %v1078 = vadd.f32 %v804, %v1046
      %v1079 = vadd.f32 %v805, %v1047
      %v1080 = vadd.f32 %v806, %v1048
      %v1081 = vadd.f32 %v807, %v1049
      %v1082 = vadd.f32 %v808, %v1050
      %v1083 = vadd.f32 %v809, %v1051
      %v1084 = vadd.f32 %v810, %v1052
      %1085 = vset.pattern.permute.xlu0 3
      %1086 = vperm.xlu0 %1085, %v262
      %v1087 = vpop.permute.xlu0 %1086
      %1089 = vset.pattern.permute.xlu0 3
      %1090 = vperm.xlu0 %1089, %v263
      %v1091 = vpop.permute.xlu0 %1090
      %1093 = vset.pattern.permute.xlu0 3
      %1094 = vperm.xlu0 %1093, %v264
      %v1095 = vpop.permute.xlu0 %1094
      %1097 = vset.pattern.permute.xlu0 3
      %1098 = vperm.xlu0 %1097, %v265
      %v1099 = vpop.permute.xlu0 %1098
      %1101 = vset.pattern.permute.xlu0 3
      %1102 = vperm.xlu0 %1101, %v266
      %v1103 = vpop.permute.xlu0 %1102
      %1105 = vset.pattern.permute.xlu0 3
      %1106 = vperm.xlu0 %1105, %v267
      %v1107 = vpop.permute.xlu0 %1106
      %1109 = vset.pattern.permute.xlu0 3
      %1110 = vperm.xlu0 %1109, %v268
      %v1111 = vpop.permute.xlu0 %1110
      %1113 = vset.pattern.permute.xlu0 3
      %1114 = vperm.xlu0 %1113, %v269
      %v1115 = vpop.permute.xlu0 %1114
      %1117 = vset.pattern.permute.xlu0 3
      %1118 = vperm.xlu0 %1117, %v270
      %v1119 = vpop.permute.xlu0 %1118
      %1121 = vset.pattern.permute.xlu0 3
      %1122 = vperm.xlu0 %1121, %v271
      %v1123 = vpop.permute.xlu0 %1122
      %1125 = vset.pattern.permute.xlu0 3
      %1126 = vperm.xlu0 %1125, %v272
      %v1127 = vpop.permute.xlu0 %1126
      %1129 = vset.pattern.permute.xlu0 3
      %1130 = vperm.xlu0 %1129, %v273
      %v1131 = vpop.permute.xlu0 %1130
      %1133 = vset.pattern.permute.xlu0 3
      %1134 = vperm.xlu0 %1133, %v274
      %v1135 = vpop.permute.xlu0 %1134
      %1137 = vset.pattern.permute.xlu0 3
      %1138 = vperm.xlu0 %1137, %v275
      %v1139 = vpop.permute.xlu0 %1138
      %1141 = vset.pattern.permute.xlu0 3
      %1142 = vperm.xlu0 %1141, %v276
      %v1143 = vpop.permute.xlu0 %1142
      %1145 = vset.pattern.permute.xlu0 3
      %1146 = vperm.xlu0 %1145, %v277
      %v1147 = vpop.permute.xlu0 %1146
      %v1149 = vlaneseq
      %v1150 = vshrl.u32 %v1149, 7
      %v1151 = vsub.s32 3, %v1150
      %v1152 = vrot.slane %v261, %v1151
      %v1153 = vlaneseq
      %v1154 = vshrl.u32 %v1153, 7
      %v1155 = vsub.s32 7, %v1154
      %v1156 = vrot.slane %v261, %v1155
      %v1159 = vlaneseq
      %v1160 = vshrl.u32 %v1159, 7
      %v1161 = vsub.s32 3, %v1160
      %v1162 = vrot.slane %v1152, %v1161
      %v1163 = vlaneseq
      %v1164 = vshrl.u32 %v1163, 7
      %v1165 = vsub.s32 3, %v1164
      %v1166 = vrot.slane %v1156, %v1165
      %v1167 = vmul.f32 %v1087, %v1162
      %v1168 = vmul.f32 %v1087, %v1166
      %v1169 = vmul.f32 %v1091, %v1162
      %v1170 = vmul.f32 %v1091, %v1166
      %v1171 = vmul.f32 %v1095, %v1162
      %v1172 = vmul.f32 %v1095, %v1166
      %v1173 = vmul.f32 %v1099, %v1162
      %v1174 = vmul.f32 %v1099, %v1166
      %v1175 = vmul.f32 %v1103, %v1162
      %v1176 = vmul.f32 %v1103, %v1166
      %v1177 = vmul.f32 %v1107, %v1162
      %v1178 = vmul.f32 %v1107, %v1166
      %v1179 = vmul.f32 %v1111, %v1162
      %v1180 = vmul.f32 %v1111, %v1166
      %v1181 = vmul.f32 %v1115, %v1162
      %v1182 = vmul.f32 %v1115, %v1166
      %v1183 = vmul.f32 %v1119, %v1162
      %v1184 = vmul.f32 %v1119, %v1166
      %v1185 = vmul.f32 %v1123, %v1162
      %v1186 = vmul.f32 %v1123, %v1166
      %v1187 = vmul.f32 %v1127, %v1162
      %v1188 = vmul.f32 %v1127, %v1166
      %v1189 = vmul.f32 %v1131, %v1162
      %v1190 = vmul.f32 %v1131, %v1166
      %v1191 = vmul.f32 %v1135, %v1162
      %v1192 = vmul.f32 %v1135, %v1166
      %v1193 = vmul.f32 %v1139, %v1162
      %v1194 = vmul.f32 %v1139, %v1166
      %v1195 = vmul.f32 %v1143, %v1162
      %v1196 = vmul.f32 %v1143, %v1166
      %v1197 = vmul.f32 %v1147, %v1162
      %v1198 = vmul.f32 %v1147, %v1166
      %v1199 = vadd.f32 %v925, %v1167
      %v1200 = vadd.f32 %v926, %v1168
      %v1201 = vadd.f32 %v927, %v1169
      %v1202 = vadd.f32 %v928, %v1170
      %v1203 = vadd.f32 %v929, %v1171
      %v1204 = vadd.f32 %v930, %v1172
      %v1205 = vadd.f32 %v931, %v1173
      %v1206 = vadd.f32 %v932, %v1174
      %v1207 = vadd.f32 %v933, %v1175
      %v1208 = vadd.f32 %v934, %v1176
      %v1209 = vadd.f32 %v935, %v1177
      %v1210 = vadd.f32 %v936, %v1178
      %v1211 = vadd.f32 %v937, %v1179
      %v1212 = vadd.f32 %v938, %v1180
      %v1213 = vadd.f32 %v939, %v1181
      %v1214 = vadd.f32 %v940, %v1182
      %v1215 = vadd.f32 %v941, %v1183
      %v1216 = vadd.f32 %v942, %v1184
      %v1217 = vadd.f32 %v943, %v1185
      %v1218 = vadd.f32 %v944, %v1186
      %v1219 = vadd.f32 %v945, %v1187
      %v1220 = vadd.f32 %v946, %v1188
      %v1221 = vadd.f32 %v947, %v1189
      %v1222 = vadd.f32 %v948, %v1190
      %v1223 = vadd.f32 %v949, %v1191
      %v1224 = vadd.f32 %v950, %v1192
      %v1225 = vadd.f32 %v951, %v1193
      %v1226 = vadd.f32 %v952, %v1194
      %v1227 = vadd.f32 %v953, %v1195
      %v1228 = vadd.f32 %v954, %v1196
      %v1229 = vadd.f32 %v955, %v1197
      %v1230 = vadd.f32 %v956, %v1198
      %1231 = vset.pattern.permute.xlu0 3
      %1232 = vperm.xlu0 %1231, %v278
      %v1233 = vpop.permute.xlu0 %1232
      %1235 = vset.pattern.permute.xlu0 3
      %1236 = vperm.xlu0 %1235, %v279
      %v1237 = vpop.permute.xlu0 %1236
      %1239 = vset.pattern.permute.xlu0 3
      %1240 = vperm.xlu0 %1239, %v280
      %v1241 = vpop.permute.xlu0 %1240
      %1243 = vset.pattern.permute.xlu0 3
      %1244 = vperm.xlu0 %1243, %v281
      %v1245 = vpop.permute.xlu0 %1244
      %1247 = vset.pattern.permute.xlu0 3
      %1248 = vperm.xlu0 %1247, %v282
      %v1249 = vpop.permute.xlu0 %1248
      %1251 = vset.pattern.permute.xlu0 3
      %1252 = vperm.xlu0 %1251, %v283
      %v1253 = vpop.permute.xlu0 %1252
      %1255 = vset.pattern.permute.xlu0 3
      %1256 = vperm.xlu0 %1255, %v284
      %v1257 = vpop.permute.xlu0 %1256
      %1259 = vset.pattern.permute.xlu0 3
      %1260 = vperm.xlu0 %1259, %v285
      %v1261 = vpop.permute.xlu0 %1260
      %1263 = vset.pattern.permute.xlu0 3
      %1264 = vperm.xlu0 %1263, %v286
      %v1265 = vpop.permute.xlu0 %1264
      %1267 = vset.pattern.permute.xlu0 3
      %1268 = vperm.xlu0 %1267, %v287
      %v1269 = vpop.permute.xlu0 %1268
      %1271 = vset.pattern.permute.xlu0 3
      %1272 = vperm.xlu0 %1271, %v288
      %v1273 = vpop.permute.xlu0 %1272
      %1275 = vset.pattern.permute.xlu0 3
      %1276 = vperm.xlu0 %1275, %v289
      %v1277 = vpop.permute.xlu0 %1276
      %1279 = vset.pattern.permute.xlu0 3
      %1280 = vperm.xlu0 %1279, %v290
      %v1281 = vpop.permute.xlu0 %1280
      %1283 = vset.pattern.permute.xlu0 3
      %1284 = vperm.xlu0 %1283, %v291
      %v1285 = vpop.permute.xlu0 %1284
      %1287 = vset.pattern.permute.xlu0 3
      %1288 = vperm.xlu0 %1287, %v292
      %v1289 = vpop.permute.xlu0 %1288
      %1291 = vset.pattern.permute.xlu0 3
      %1292 = vperm.xlu0 %1291, %v293
      %v1293 = vpop.permute.xlu0 %1292
      %v1295 = vmul.f32 %v1233, %v1162
      %v1296 = vmul.f32 %v1233, %v1166
      %v1297 = vmul.f32 %v1237, %v1162
      %v1298 = vmul.f32 %v1237, %v1166
      %v1299 = vmul.f32 %v1241, %v1162
      %v1300 = vmul.f32 %v1241, %v1166
      %v1301 = vmul.f32 %v1245, %v1162
      %v1302 = vmul.f32 %v1245, %v1166
      %v1303 = vmul.f32 %v1249, %v1162
      %v1304 = vmul.f32 %v1249, %v1166
      %v1305 = vmul.f32 %v1253, %v1162
      %v1306 = vmul.f32 %v1253, %v1166
      %v1307 = vmul.f32 %v1257, %v1162
      %v1308 = vmul.f32 %v1257, %v1166
      %v1309 = vmul.f32 %v1261, %v1162
      %v1310 = vmul.f32 %v1261, %v1166
      %v1311 = vmul.f32 %v1265, %v1162
      %v1312 = vmul.f32 %v1265, %v1166
      %v1313 = vmul.f32 %v1269, %v1162
      %v1314 = vmul.f32 %v1269, %v1166
      %v1315 = vmul.f32 %v1273, %v1162
      %v1316 = vmul.f32 %v1273, %v1166
      %v1317 = vmul.f32 %v1277, %v1162
      %v1318 = vmul.f32 %v1277, %v1166
      %v1319 = vmul.f32 %v1281, %v1162
      %v1320 = vmul.f32 %v1281, %v1166
      %v1321 = vmul.f32 %v1285, %v1162
      %v1322 = vmul.f32 %v1285, %v1166
      %v1323 = vmul.f32 %v1289, %v1162
      %v1324 = vmul.f32 %v1289, %v1166
      %v1325 = vmul.f32 %v1293, %v1162
      %v1326 = vmul.f32 %v1293, %v1166
      %v1327 = vadd.f32 %v1053, %v1295
      %v1328 = vadd.f32 %v1054, %v1296
      %v1329 = vadd.f32 %v1055, %v1297
      %v1330 = vadd.f32 %v1056, %v1298
      %v1331 = vadd.f32 %v1057, %v1299
      %v1332 = vadd.f32 %v1058, %v1300
      %v1333 = vadd.f32 %v1059, %v1301
      %v1334 = vadd.f32 %v1060, %v1302
      %v1335 = vadd.f32 %v1061, %v1303
      %v1336 = vadd.f32 %v1062, %v1304
      %v1337 = vadd.f32 %v1063, %v1305
      %v1338 = vadd.f32 %v1064, %v1306
      %v1339 = vadd.f32 %v1065, %v1307
      %v1340 = vadd.f32 %v1066, %v1308
      %v1341 = vadd.f32 %v1067, %v1309
      %v1342 = vadd.f32 %v1068, %v1310
      %v1343 = vadd.f32 %v1069, %v1311
      %v1344 = vadd.f32 %v1070, %v1312
      %v1345 = vadd.f32 %v1071, %v1313
      %v1346 = vadd.f32 %v1072, %v1314
      %v1347 = vadd.f32 %v1073, %v1315
      %v1348 = vadd.f32 %v1074, %v1316
      %v1349 = vadd.f32 %v1075, %v1317
      %v1350 = vadd.f32 %v1076, %v1318
      %v1351 = vadd.f32 %v1077, %v1319
      %v1352 = vadd.f32 %v1078, %v1320
      %v1353 = vadd.f32 %v1079, %v1321
      %v1354 = vadd.f32 %v1080, %v1322
      %v1355 = vadd.f32 %v1081, %v1323
      %v1356 = vadd.f32 %v1082, %v1324
      %v1357 = vadd.f32 %v1083, %v1325
      %v1358 = vadd.f32 %v1084, %v1326
      %1359 = vst [vmem:[%s249] sm:$0xff] %v1199
      %1360 = vst [vmem:[%s249 + $0x8] sm:$0xff] %v1200
      %1361 = vst [vmem:[%s249 + $0x10] sm:$0xff] %v1201
      %1362 = vst [vmem:[%s249 + $0x18] sm:$0xff] %v1202
      %1363 = vst [vmem:[%s249 + $0x20] sm:$0xff] %v1203
      %1364 = vst [vmem:[%s249 + $0x28] sm:$0xff] %v1204
      %1365 = vst [vmem:[%s249 + $0x30] sm:$0xff] %v1205
      %1366 = vst [vmem:[%s249 + $0x38] sm:$0xff] %v1206
      %1367 = vst [vmem:[%s249 + $0x40] sm:$0xff] %v1207
      %1368 = vst [vmem:[%s249 + $0x48] sm:$0xff] %v1208
      %1369 = vst [vmem:[%s249 + $0x50] sm:$0xff] %v1209
      %1370 = vst [vmem:[%s249 + $0x58] sm:$0xff] %v1210
      %1371 = vst [vmem:[%s249 + $0x60] sm:$0xff] %v1211
      %1372 = vst [vmem:[%s249 + $0x68] sm:$0xff] %v1212
      %1373 = vst [vmem:[%s249 + $0x70] sm:$0xff] %v1213
      %1374 = vst [vmem:[%s249 + $0x78] sm:$0xff] %v1214
      %1375 = vst [vmem:[%s249 + $0x80] sm:$0xff] %v1215
      %1376 = vst [vmem:[%s249 + $0x88] sm:$0xff] %v1216
      %1377 = vst [vmem:[%s249 + $0x90] sm:$0xff] %v1217
      %1378 = vst [vmem:[%s249 + $0x98] sm:$0xff] %v1218
      %1379 = vst [vmem:[%s249 + $0xa0] sm:$0xff] %v1219
      %1380 = vst [vmem:[%s249 + $0xa8] sm:$0xff] %v1220
      %1381 = vst [vmem:[%s249 + $0xb0] sm:$0xff] %v1221
      %1382 = vst [vmem:[%s249 + $0xb8] sm:$0xff] %v1222
      %1383 = vst [vmem:[%s249 + $0xc0] sm:$0xff] %v1223
      %1384 = vst [vmem:[%s249 + $0xc8] sm:$0xff] %v1224
      %1385 = vst [vmem:[%s249 + $0xd0] sm:$0xff] %v1225
      %1386 = vst [vmem:[%s249 + $0xd8] sm:$0xff] %v1226
      %1387 = vst [vmem:[%s249 + $0xe0] sm:$0xff] %v1227
      %1388 = vst [vmem:[%s249 + $0xe8] sm:$0xff] %v1228
      %1389 = vst [vmem:[%s249 + $0xf0] sm:$0xff] %v1229
      %1390 = vst [vmem:[%s249 + $0xf8] sm:$0xff] %v1230
      %1391 = vst [vmem:[%s259] sm:$0xff] %v1327
      %1392 = vst [vmem:[%s259 + $0x8] sm:$0xff] %v1328
      %1393 = vst [vmem:[%s259 + $0x10] sm:$0xff] %v1329
      %1394 = vst [vmem:[%s259 + $0x18] sm:$0xff] %v1330
      %1395 = vst [vmem:[%s259 + $0x20] sm:$0xff] %v1331
      %1396 = vst [vmem:[%s259 + $0x28] sm:$0xff] %v1332
      %1397 = vst [vmem:[%s259 + $0x30] sm:$0xff] %v1333
      %1398 = vst [vmem:[%s259 + $0x38] sm:$0xff] %v1334
      %1399 = vst [vmem:[%s259 + $0x40] sm:$0xff] %v1335
      %1400 = vst [vmem:[%s259 + $0x48] sm:$0xff] %v1336
      %1401 = vst [vmem:[%s259 + $0x50] sm:$0xff] %v1337
      %1402 = vst [vmem:[%s259 + $0x58] sm:$0xff] %v1338
      %1403 = vst [vmem:[%s259 + $0x60] sm:$0xff] %v1339
      %1404 = vst [vmem:[%s259 + $0x68] sm:$0xff] %v1340
      %1405 = vst [vmem:[%s259 + $0x70] sm:$0xff] %v1341
      %1406 = vst [vmem:[%s259 + $0x78] sm:$0xff] %v1342
      %1407 = vst [vmem:[%s259 + $0x80] sm:$0xff] %v1343
      %1408 = vst [vmem:[%s259 + $0x88] sm:$0xff] %v1344
      %1409 = vst [vmem:[%s259 + $0x90] sm:$0xff] %v1345
      %1410 = vst [vmem:[%s259 + $0x98] sm:$0xff] %v1346
      %1411 = vst [vmem:[%s259 + $0xa0] sm:$0xff] %v1347
      %1412 = vst [vmem:[%s259 + $0xa8] sm:$0xff] %v1348
      %1413 = vst [vmem:[%s259 + $0xb0] sm:$0xff] %v1349
      %1414 = vst [vmem:[%s259 + $0xb8] sm:$0xff] %v1350
      %1415 = vst [vmem:[%s259 + $0xc0] sm:$0xff] %v1351
      %1416 = vst [vmem:[%s259 + $0xc8] sm:$0xff] %v1352
      %1417 = vst [vmem:[%s259 + $0xd0] sm:$0xff] %v1353
      %1418 = vst [vmem:[%s259 + $0xd8] sm:$0xff] %v1354
      %1419 = vst [vmem:[%s259 + $0xe0] sm:$0xff] %v1355
      %1420 = vst [vmem:[%s259 + $0xe8] sm:$0xff] %v1356
      %1421 = vst [vmem:[%s259 + $0xf0] sm:$0xff] %v1357
      %1422 = vst [vmem:[%s259 + $0xf8] sm:$0xff] %v1358
      %s1423 = smul.u32 2, %s21
      %p1424 = scmp.lt.s32.totalorder %s20, 1
      %s1425 = scalar_select %p1424, %s20, 1
      %p1426 = scmp.lt.s32.totalorder %s1423, 1
      %s1427 = scalar_select %p1426, %s1423, 1
      %s1428 = smul.addr %s1425, 32
      %s1429 = sadd.s32 %s1427, %s1428
      %s1430 = smul.addr %s1429, 8
      %s1431 = scalar_lea.vmem %s3, %s1430
      %s1432 = smul.u32 2, %s21
      %p1433 = scmp.lt.s32.totalorder %s20, 1
      %s1434 = scalar_select %p1433, %s20, 1
      %p1435 = scmp.lt.s32.totalorder %s1432, 1
      %s1436 = scalar_select %p1435, %s1432, 1
      %s1437 = smul.addr %s1434, 32
      %s1438 = sadd.s32 %s1436, %s1437
      %s1439 = smul.addr %s1438, 8
      %s1440 = scalar_lea.vmem %s4, %s1439
      // Predicated region
      $region33: #{attention_qk_forward.1} parent=31 // pred_check
        %p1441 = pneg %p118
      $region34: #{attention_qk_forward.1} parent=31 // pred_check_branch
        %1443 = sbr.rel (%p1441) target = $region36
      $region35: #{attention_qk_forward.1} parent=31 // pred_region
        %s1444 = smul.u32 2, %s21
      $region36: #{attention_qk_forward.1} parent=31 // pred_fallthru
        _
      // Predicated region
      $region37: #{attention_qk_forward.1} parent=31 // pred_check
        %p1445 = pneg %p146
      $region38: #{attention_qk_forward.1} parent=31 // pred_check_branch
        %1447 = sbr.rel (%p1445) target = $region40
      $region39: #{attention_qk_forward.1} parent=31 // pred_region
        %s1448 = smul.u32 2, %s21
      $region40: #{attention_qk_forward.1} parent=31 // pred_fallthru
        _
    $region32: #{attention_qk_forward.1} parent=5 // pred_fallthru
      _
    %p1449 = scmp.le.s32.totalorder 2, %s11
    // Predicated region
    $region41: #{attention_qk_forward.1} parent=5 // pred_check
      %p1450 = pneg %p1449
    $region42: #{attention_qk_forward.1} parent=5 // pred_check_branch
      %1452 = sbr.rel (%p1450) target = $region44
    $region43: #{attention_qk_forward.1} parent=5 // pred_region
      %s1453 = ssub.s32 %s11, 2
      // Predicated region
      $region45: #{attention_qk_forward.1} parent=43 // pred_check
        %p1454 = pneg %p124
      $region46: #{attention_qk_forward.1} parent=43 // pred_check_branch
        %1456 = sbr.rel (%p1454) target = $region48
      $region47: #{attention_qk_forward.1} parent=43 // pred_region
        %s1457 = smul.u32 2, %s23
        %p1458 = scmp.lt.s32.totalorder %s22, 1
        %s1459 = scalar_select %p1458, %s22, 1
        %p1460 = scmp.lt.s32.totalorder %s1457, 1
        %s1461 = scalar_select %p1460, %s1457, 1
        %s1462 = smul.addr %s1459, 32
        %s1463 = sadd.s32 %s1461, %s1462
        %s1464 = smul.addr %s1463, 8
        %s1465 = scalar_lea.vmem %s3, %s1464
      $region48: #{attention_qk_forward.1} parent=43 // pred_fallthru
        _
      // Predicated region
      $region49: #{attention_qk_forward.1} parent=43 // pred_check
        %p1466 = pneg %p152
      $region50: #{attention_qk_forward.1} parent=43 // pred_check_branch
        %1468 = sbr.rel (%p1466) target = $region52
      $region51: #{attention_qk_forward.1} parent=43 // pred_region
        %s1469 = smul.u32 2, %s23
        %p1470 = scmp.lt.s32.totalorder %s22, 1
        %s1471 = scalar_select %p1470, %s22, 1
        %p1472 = scmp.lt.s32.totalorder %s1469, 1
        %s1473 = scalar_select %p1472, %s1469, 1
        %s1474 = smul.addr %s1471, 32
        %s1475 = sadd.s32 %s1473, %s1474
        %s1476 = smul.addr %s1475, 8
        %s1477 = scalar_lea.vmem %s4, %s1476
      $region52: #{attention_qk_forward.1} parent=43 // pred_fallthru
        _
    $region44: #{attention_qk_forward.1} parent=5 // pred_fallthru
      _
  $region6: #{attention_qk_forward.1} parent=0 // loop_footer
    %s15 = sadd.s32 1, %s11
  $region7: #{attention_qk_forward.1} parent=0 // loop_footer_branch
    %10 = sbr.rel target = $region3
  $region8: #{attention_qk_forward.1} parent=0 // loop_exit
    _

</llo_original>
